<compile_context>
chip_gen: v5e
topology: v5e:2x2
jax: 0.10.0
libtpu: 0.0.40
codegen_flags: <defaults>
</compile_context>

<pallas_src>
import jax
import jax.numpy as jnp
from jax.experimental import pallas as pl
from jax.experimental.pallas import tpu as pltpu

EMBED_DIM = 32               # embedding_dim E
NUM_FEATS = 4                # day, week, month, year
LANES = 128
PACK = LANES // EMBED_DIM    # 4 samples per 128-lane row
TILE_ROWS = 512              # packed rows per grid step (= 2048 samples)

# TODO(synk): nn.Dropout(p=0.2) is identity at inference; training-mode dropout
#             (random masking) is not implemented.


# -----------------------------------------------------------------------------
# Kernel: out_packed = x_packed @ blockdiag(A,A,A,A) + tile(c,4), as VPU FMAs
# -----------------------------------------------------------------------------
def temporal_encoder_kernel(x_ref, a_ref, c_ref, o_ref):
    # x: (TILE, 16)   4 packed samples x 4 features per row
    # a: (16, 128)    block-diagonal folded weight  kron(I4, A)
    # c: (1, 128)     folded bias, tiled across the 4 packed samples
    x = x_ref[...]
    a = a_ref[...]
    acc = jnp.zeros(o_ref.shape, jnp.float32) + c_ref[...]
    for j in range(x.shape[-1]):                 # static unroll: 16 exact-f32 FMAs
        acc = acc + x[:, j:j + 1] * a[j:j + 1, :]
    o_ref[...] = acc.astype(o_ref.dtype)         # lane-dense (TILE, 128) store


# -----------------------------------------------------------------------------
# Wrapper: fold params, pack 4 samples / 128 lanes, tile rows over a grid
# -----------------------------------------------------------------------------
def _fold_params(params):
    """Fold 4x Linear(1,E) + Linear(4E,E) into a single (4,E) affine map."""
    E = EMBED_DIM
    hp = jax.lax.Precision.HIGHEST
    wf = params["wf_t"].reshape(NUM_FEATS, E, E)                        # (4,E,E)
    A = jnp.einsum("je,jef->jf", params["wemb"], wf, precision=hp)      # (4,E)
    c = params["bf"] + jnp.einsum("je,jef->f", params["bemb"], wf,
                                  precision=hp)[None, :]                # (1,E)
    return A, c


def temporal_feature_encoder_call(t, A, c, *, tile_rows=TILE_ROWS):
    N = t.shape[0]
    E = A.shape[1]

    # Pack PACK samples per row -> lane-dense input DMA and output store.
    rows = pl.cdiv(N, PACK)
    tile = min(tile_rows, max(8, ((rows + 7) // 8) * 8))   # multiple of 8
    rows_pad = ((rows + tile - 1) // tile) * tile
    n_pad = rows_pad * PACK

    t_pad = jnp.pad(t, ((0, n_pad - N), (0, 0)))
    x = t_pad.reshape(rows_pad, PACK * NUM_FEATS)           # (rows_pad, 16)

    a_blk = jnp.kron(jnp.eye(PACK, dtype=A.dtype), A)       # (16, 128)
    c_blk = jnp.tile(c, (1, PACK))                           # (1, 128)

    out_packed = pl.pallas_call(
        temporal_encoder_kernel,
        out_shape=jax.ShapeDtypeStruct((rows_pad, PACK * E), jnp.float32),
        grid=(rows_pad // tile,),
        in_specs=[
            pl.BlockSpec((tile, PACK * NUM_FEATS), lambda i: (i, 0)),  # row tiles
            pl.BlockSpec(a_blk.shape, lambda i: (0, 0)),               # resident
            pl.BlockSpec(c_blk.shape, lambda i: (0, 0)),               # resident
        ],
        out_specs=pl.BlockSpec((tile, PACK * E), lambda i: (i, 0)),
        compiler_params=pltpu.CompilerParams(
            dimension_semantics=("parallel",)),               # 2 TCs on v7x
    )(x, a_blk, c_blk)

    return out_packed.reshape(n_pad, E)[:N]


@jax.jit
def temporal_feature_encoder(temporal_features, params):
    A, c = _fold_params(params)
    return temporal_feature_encoder_call(temporal_features, A, c)


# -----------------------------------------------------------------------------
# Deterministic synthetic parameters + pure-JAX reference (PyTorch-faithful,
# UNFOLDED path, HIGHEST precision) to validate the algebraic fold.
# -----------------------------------------------------------------------------
def init_params(key):
    E = EMBED_DIM
    keys = iter(jax.random.split(key, 12))

    def nrm(shape, scale=0.1):
        return scale * jax.random.normal(next(keys), shape, jnp.float32)

    # Four Linear(1, E): weight (E,1) stored as a row of (4,E); bias as (4,E).
    wemb = jnp.stack([nrm((E,)) for _ in range(NUM_FEATS)], axis=0)   # (4, E)
    bemb = jnp.stack([nrm((E,)) for _ in range(NUM_FEATS)], axis=0)   # (4, E)
    # Fusion Linear(4E, E): PyTorch weight (E, 4E) -> transposed (4E, E).
    wf_t = nrm((NUM_FEATS * E, E))                                    # (4E, E)
    bf = nrm((1, E))                                                  # (1, E)
    return {"wemb": wemb, "bemb": bemb, "wf_t": wf_t, "bf": bf}


def reference_forward(t, params):
    hp = jax.lax.Precision.HIGHEST
    embs = []
    for j in range(NUM_FEATS):
        embs.append(t[:, j:j + 1] * params["wemb"][j][None, :]
                    + params["bemb"][j][None, :])
    x = jnp.concatenate(embs, axis=1)                                 # (N, 4E)
    out = jnp.dot(x, params["wf_t"], precision=hp) + params["bf"]     # (N, E)
    return out                                                        # dropout = id


# -----------------------------------------------------------------------------
if __name__ == "__main__":
    key = jax.random.PRNGKey(0)
    pkey, xkey = jax.random.split(key)
    params = init_params(pkey)

    # Small demo shape consistent with the module: batch=8, 4 temporal features.
    N = 8
    temporal_features = jax.random.normal(xkey, (N, NUM_FEATS), jnp.float32)

    out = temporal_feature_encoder(temporal_features, params)
    out = jax.block_until_ready(out)

    assert out.shape == (N, EMBED_DIM), out.shape
    assert bool(jnp.all(jnp.isfinite(out)))

    ref = reference_forward(temporal_features, params)
    max_err = float(jnp.max(jnp.abs(out - ref)))
    assert bool(jnp.allclose(out, ref, atol=1e-4, rtol=1e-4)), max_err

    # Extra check: batch not divisible by the 4-sample lane packing (padding path).
    N2 = 37
    t2 = jax.random.normal(jax.random.PRNGKey(7), (N2, NUM_FEATS), jnp.float32)
    out2 = jax.block_until_ready(temporal_feature_encoder(t2, params))
    ref2 = reference_forward(t2, params)
    assert out2.shape == (N2, EMBED_DIM)
    assert bool(jnp.allclose(out2, ref2, atol=1e-4, rtol=1e-4))

    print("KERNEL_OK")
</pallas_src>

<mosaic_0001>
module attributes {stable_mosaic.version = 11 : i64} {
  func.func @temporal_encoder_kernel(%arg0: i32, %arg1: memref<8x16xf32, #tpu.memory_space<vmem>>, %arg2: memref<16x128xf32, #tpu.memory_space<vmem>>, %arg3: memref<1x128xf32, #tpu.memory_space<vmem>>, %arg4: memref<8x128xf32, #tpu.memory_space<vmem>>) attributes {dimension_semantics = [#tpu.dimension_semantics<parallel>], iteration_bounds = array<i64: 1>, scalar_prefetch = 0 : i64, scratch_operands = 0 : i64, tpu.core_type = #tpu.core_type<tc>, window_params = [{transform_indices = @transform_0, window_bounds = array<i64: 8, 16>}, {pipeline_mode = #tpu.pipeline_mode<synchronous>, transform_indices = @transform_1, window_bounds = array<i64: 16, 128>}, {pipeline_mode = #tpu.pipeline_mode<synchronous>, transform_indices = @transform_2, window_bounds = array<i64: 1, 128>}, {transform_indices = @transform_3, window_bounds = array<i64: 8, 128>}]} {
    %c0 = arith.constant 0 : index
    %c0_0 = arith.constant 0 : index
    %0 = vector.load %arg1[%c0, %c0_0] : memref<8x16xf32, #tpu.memory_space<vmem>>, vector<8x16xf32>
    %c0_1 = arith.constant 0 : index
    %c0_2 = arith.constant 0 : index
    %1 = vector.load %arg2[%c0_1, %c0_2] : memref<16x128xf32, #tpu.memory_space<vmem>>, vector<16x128xf32>
    %cst = arith.constant 0.000000e+00 : f32
    %2 = vector.broadcast %cst : f32 to vector<8x128xf32>
    %c0_3 = arith.constant 0 : index
    %c0_4 = arith.constant 0 : index
    %3 = vector.load %arg3[%c0_3, %c0_4] : memref<1x128xf32, #tpu.memory_space<vmem>>, vector<1x128xf32>
    %4 = vector.broadcast %3 : vector<1x128xf32> to vector<8x128xf32>
    %5 = arith.addf %2, %4 : vector<8x128xf32>
    %6 = vector.extract_strided_slice %0 {offsets = [0, 0], sizes = [8, 1], strides = [1, 1]} : vector<8x16xf32> to vector<8x1xf32>
    %7 = vector.extract_strided_slice %1 {offsets = [0, 0], sizes = [1, 128], strides = [1, 1]} : vector<16x128xf32> to vector<1x128xf32>
    %8 = vector.broadcast %6 : vector<8x1xf32> to vector<8x128xf32>
    %9 = vector.broadcast %7 : vector<1x128xf32> to vector<8x128xf32>
    %10 = arith.mulf %8, %9 : vector<8x128xf32>
    %11 = arith.addf %5, %10 : vector<8x128xf32>
    %12 = vector.extract_strided_slice %0 {offsets = [0, 1], sizes = [8, 1], strides = [1, 1]} : vector<8x16xf32> to vector<8x1xf32>
    %13 = vector.extract_strided_slice %1 {offsets = [1, 0], sizes = [1, 128], strides = [1, 1]} : vector<16x128xf32> to vector<1x128xf32>
    %14 = vector.broadcast %12 : vector<8x1xf32> to vector<8x128xf32>
    %15 = vector.broadcast %13 : vector<1x128xf32> to vector<8x128xf32>
    %16 = arith.mulf %14, %15 : vector<8x128xf32>
    %17 = arith.addf %11, %16 : vector<8x128xf32>
    %18 = vector.extract_strided_slice %0 {offsets = [0, 2], sizes = [8, 1], strides = [1, 1]} : vector<8x16xf32> to vector<8x1xf32>
    %19 = vector.extract_strided_slice %1 {offsets = [2, 0], sizes = [1, 128], strides = [1, 1]} : vector<16x128xf32> to vector<1x128xf32>
    %20 = vector.broadcast %18 : vector<8x1xf32> to vector<8x128xf32>
    %21 = vector.broadcast %19 : vector<1x128xf32> to vector<8x128xf32>
    %22 = arith.mulf %20, %21 : vector<8x128xf32>
    %23 = arith.addf %17, %22 : vector<8x128xf32>
    %24 = vector.extract_strided_slice %0 {offsets = [0, 3], sizes = [8, 1], strides = [1, 1]} : vector<8x16xf32> to vector<8x1xf32>
    %25 = vector.extract_strided_slice %1 {offsets = [3, 0], sizes = [1, 128], strides = [1, 1]} : vector<16x128xf32> to vector<1x128xf32>
    %26 = vector.broadcast %24 : vector<8x1xf32> to vector<8x128xf32>
    %27 = vector.broadcast %25 : vector<1x128xf32> to vector<8x128xf32>
    %28 = arith.mulf %26, %27 : vector<8x128xf32>
    %29 = arith.addf %23, %28 : vector<8x128xf32>
    %30 = vector.extract_strided_slice %0 {offsets = [0, 4], sizes = [8, 1], strides = [1, 1]} : vector<8x16xf32> to vector<8x1xf32>
    %31 = vector.extract_strided_slice %1 {offsets = [4, 0], sizes = [1, 128], strides = [1, 1]} : vector<16x128xf32> to vector<1x128xf32>
    %32 = vector.broadcast %30 : vector<8x1xf32> to vector<8x128xf32>
    %33 = vector.broadcast %31 : vector<1x128xf32> to vector<8x128xf32>
    %34 = arith.mulf %32, %33 : vector<8x128xf32>
    %35 = arith.addf %29, %34 : vector<8x128xf32>
    %36 = vector.extract_strided_slice %0 {offsets = [0, 5], sizes = [8, 1], strides = [1, 1]} : vector<8x16xf32> to vector<8x1xf32>
    %37 = vector.extract_strided_slice %1 {offsets = [5, 0], sizes = [1, 128], strides = [1, 1]} : vector<16x128xf32> to vector<1x128xf32>
    %38 = vector.broadcast %36 : vector<8x1xf32> to vector<8x128xf32>
    %39 = vector.broadcast %37 : vector<1x128xf32> to vector<8x128xf32>
    %40 = arith.mulf %38, %39 : vector<8x128xf32>
    %41 = arith.addf %35, %40 : vector<8x128xf32>
    %42 = vector.extract_strided_slice %0 {offsets = [0, 6], sizes = [8, 1], strides = [1, 1]} : vector<8x16xf32> to vector<8x1xf32>
    %43 = vector.extract_strided_slice %1 {offsets = [6, 0], sizes = [1, 128], strides = [1, 1]} : vector<16x128xf32> to vector<1x128xf32>
    %44 = vector.broadcast %42 : vector<8x1xf32> to vector<8x128xf32>
    %45 = vector.broadcast %43 : vector<1x128xf32> to vector<8x128xf32>
    %46 = arith.mulf %44, %45 : vector<8x128xf32>
    %47 = arith.addf %41, %46 : vector<8x128xf32>
    %48 = vector.extract_strided_slice %0 {offsets = [0, 7], sizes = [8, 1], strides = [1, 1]} : vector<8x16xf32> to vector<8x1xf32>
    %49 = vector.extract_strided_slice %1 {offsets = [7, 0], sizes = [1, 128], strides = [1, 1]} : vector<16x128xf32> to vector<1x128xf32>
    %50 = vector.broadcast %48 : vector<8x1xf32> to vector<8x128xf32>
    %51 = vector.broadcast %49 : vector<1x128xf32> to vector<8x128xf32>
    %52 = arith.mulf %50, %51 : vector<8x128xf32>
    %53 = arith.addf %47, %52 : vector<8x128xf32>
    %54 = vector.extract_strided_slice %0 {offsets = [0, 8], sizes = [8, 1], strides = [1, 1]} : vector<8x16xf32> to vector<8x1xf32>
    %55 = vector.extract_strided_slice %1 {offsets = [8, 0], sizes = [1, 128], strides = [1, 1]} : vector<16x128xf32> to vector<1x128xf32>
    %56 = vector.broadcast %54 : vector<8x1xf32> to vector<8x128xf32>
    %57 = vector.broadcast %55 : vector<1x128xf32> to vector<8x128xf32>
    %58 = arith.mulf %56, %57 : vector<8x128xf32>
    %59 = arith.addf %53, %58 : vector<8x128xf32>
    %60 = vector.extract_strided_slice %0 {offsets = [0, 9], sizes = [8, 1], strides = [1, 1]} : vector<8x16xf32> to vector<8x1xf32>
    %61 = vector.extract_strided_slice %1 {offsets = [9, 0], sizes = [1, 128], strides = [1, 1]} : vector<16x128xf32> to vector<1x128xf32>
    %62 = vector.broadcast %60 : vector<8x1xf32> to vector<8x128xf32>
    %63 = vector.broadcast %61 : vector<1x128xf32> to vector<8x128xf32>
    %64 = arith.mulf %62, %63 : vector<8x128xf32>
    %65 = arith.addf %59, %64 : vector<8x128xf32>
    %66 = vector.extract_strided_slice %0 {offsets = [0, 10], sizes = [8, 1], strides = [1, 1]} : vector<8x16xf32> to vector<8x1xf32>
    %67 = vector.extract_strided_slice %1 {offsets = [10, 0], sizes = [1, 128], strides = [1, 1]} : vector<16x128xf32> to vector<1x128xf32>
    %68 = vector.broadcast %66 : vector<8x1xf32> to vector<8x128xf32>
    %69 = vector.broadcast %67 : vector<1x128xf32> to vector<8x128xf32>
    %70 = arith.mulf %68, %69 : vector<8x128xf32>
    %71 = arith.addf %65, %70 : vector<8x128xf32>
    %72 = vector.extract_strided_slice %0 {offsets = [0, 11], sizes = [8, 1], strides = [1, 1]} : vector<8x16xf32> to vector<8x1xf32>
    %73 = vector.extract_strided_slice %1 {offsets = [11, 0], sizes = [1, 128], strides = [1, 1]} : vector<16x128xf32> to vector<1x128xf32>
    %74 = vector.broadcast %72 : vector<8x1xf32> to vector<8x128xf32>
    %75 = vector.broadcast %73 : vector<1x128xf32> to vector<8x128xf32>
    %76 = arith.mulf %74, %75 : vector<8x128xf32>
    %77 = arith.addf %71, %76 : vector<8x128xf32>
    %78 = vector.extract_strided_slice %0 {offsets = [0, 12], sizes = [8, 1], strides = [1, 1]} : vector<8x16xf32> to vector<8x1xf32>
    %79 = vector.extract_strided_slice %1 {offsets = [12, 0], sizes = [1, 128], strides = [1, 1]} : vector<16x128xf32> to vector<1x128xf32>
    %80 = vector.broadcast %78 : vector<8x1xf32> to vector<8x128xf32>
    %81 = vector.broadcast %79 : vector<1x128xf32> to vector<8x128xf32>
    %82 = arith.mulf %80, %81 : vector<8x128xf32>
    %83 = arith.addf %77, %82 : vector<8x128xf32>
    %84 = vector.extract_strided_slice %0 {offsets = [0, 13], sizes = [8, 1], strides = [1, 1]} : vector<8x16xf32> to vector<8x1xf32>
    %85 = vector.extract_strided_slice %1 {offsets = [13, 0], sizes = [1, 128], strides = [1, 1]} : vector<16x128xf32> to vector<1x128xf32>
    %86 = vector.broadcast %84 : vector<8x1xf32> to vector<8x128xf32>
    %87 = vector.broadcast %85 : vector<1x128xf32> to vector<8x128xf32>
    %88 = arith.mulf %86, %87 : vector<8x128xf32>
    %89 = arith.addf %83, %88 : vector<8x128xf32>
    %90 = vector.extract_strided_slice %0 {offsets = [0, 14], sizes = [8, 1], strides = [1, 1]} : vector<8x16xf32> to vector<8x1xf32>
    %91 = vector.extract_strided_slice %1 {offsets = [14, 0], sizes = [1, 128], strides = [1, 1]} : vector<16x128xf32> to vector<1x128xf32>
    %92 = vector.broadcast %90 : vector<8x1xf32> to vector<8x128xf32>
    %93 = vector.broadcast %91 : vector<1x128xf32> to vector<8x128xf32>
    %94 = arith.mulf %92, %93 : vector<8x128xf32>
    %95 = arith.addf %89, %94 : vector<8x128xf32>
    %96 = vector.extract_strided_slice %0 {offsets = [0, 15], sizes = [8, 1], strides = [1, 1]} : vector<8x16xf32> to vector<8x1xf32>
    %97 = vector.extract_strided_slice %1 {offsets = [15, 0], sizes = [1, 128], strides = [1, 1]} : vector<16x128xf32> to vector<1x128xf32>
    %98 = vector.broadcast %96 : vector<8x1xf32> to vector<8x128xf32>
    %99 = vector.broadcast %97 : vector<1x128xf32> to vector<8x128xf32>
    %100 = arith.mulf %98, %99 : vector<8x128xf32>
    %101 = arith.addf %95, %100 : vector<8x128xf32>
    %c0_5 = arith.constant 0 : index
    %c0_6 = arith.constant 0 : index
    %102 = vector.load %arg4[%c0_5, %c0_6] : memref<8x128xf32, #tpu.memory_space<vmem>>, vector<8x128xf32>
    tpu.vector_store %arg4[%c0_5, %c0_6], %101 {strides = array<i32>} : memref<8x128xf32, #tpu.memory_space<vmem>>, vector<8x128xf32>,
    return
  }
  func.func @transform_0(%arg0: i32) -> (i32, i32) {
    %c0_i32 = arith.constant 0 : i32
    %c0_i32_0 = arith.constant 0 : i32
    return %arg0, %c0_i32 : i32, i32
  }
  func.func @transform_1(%arg0: i32) -> (i32, i32) {
    %c0_i32 = arith.constant 0 : i32
    %c0_i32_0 = arith.constant 0 : i32
    %c0_i32_1 = arith.constant 0 : i32
    return %c0_i32, %c0_i32_0 : i32, i32
  }
  func.func @transform_2(%arg0: i32) -> (i32, i32) {
    %c0_i32 = arith.constant 0 : i32
    %c0_i32_0 = arith.constant 0 : i32
    %c0_i32_1 = arith.constant 0 : i32
    return %c0_i32, %c0_i32_0 : i32, i32
  }
  func.func @transform_3(%arg0: i32) -> (i32, i32) {
    %c0_i32 = arith.constant 0 : i32
    %c0_i32_0 = arith.constant 0 : i32
    return %arg0, %c0_i32 : i32, i32
  }
}

</mosaic_0001>

<llo_original>
// kernel: temporal_feature_encoder.1
$region0: #{temporal_feature_encoder.1}
  #allocation0 [shape = 'u32[]', space=smem, size = 0x4, offset = 0x4, fixed_abs, tag = 'smem constant byte address 0x4 - core index']
  #allocation1 [shape = 'u32[72,128]{1,0:T(1,128)}', space=vmem, size = 0x9000, scoped, tag = 'internal scratch']
  %s0 = inlined_call_operand.vmem [shape: f32[8,16], index: 0, kind: input, shape index: {}]
  %s1 = inlined_call_operand.vmem [shape: f32[16,128], index: 1, kind: input, shape index: {}]
  %s2 = inlined_call_operand.vmem [shape: f32[1,128], index: 2, kind: input, shape index: {}]
  %s3 = inlined_call_operand.vmem [shape: f32[8,128], index: 3, kind: output, shape index: {}]
  %s4 = sld [smem:[#allocation0]]
  $region22: #{temporal_feature_encoder.1} parent=0
    _
  %s6 = ssub.s32 1, %s4
  %s7 = scalar_select 0, %s6, %s4
  // Predicated region
  $region2: #{temporal_feature_encoder.1} parent=0 // pred_check
    _
  $region3: #{temporal_feature_encoder.1} parent=0 // pred_check_branch
    %9 = sbr.rel (0) target = $region5
  $region4: #{temporal_feature_encoder.1} parent=0 // pred_region
    _
  $region5: #{temporal_feature_encoder.1} parent=0 // pred_fallthru
    _
  // Predicated region
  $region6: #{temporal_feature_encoder.1} parent=0 // pred_check
    _
  $region7: #{temporal_feature_encoder.1} parent=0 // pred_check_branch
    %11 = sbr.rel (0) target = $region9
  $region8: #{temporal_feature_encoder.1} parent=0 // pred_region
    _
  $region9: #{temporal_feature_encoder.1} parent=0 // pred_fallthru
    _
  // Predicated region
  $region10: #{temporal_feature_encoder.1} parent=0 // pred_check
    _
  $region11: #{temporal_feature_encoder.1} parent=0 // pred_check_branch
    %13 = sbr.rel (0) target = $region13
  $region12: #{temporal_feature_encoder.1} parent=0 // pred_region
    _
  $region13: #{temporal_feature_encoder.1} parent=0 // pred_fallthru
    _
  %v14 = vld [vmem:[%s0] sm:$0xff]
  %v15 = vld [vmem:[%s1] sm:$0xff]
  %v16 = vld [vmem:[%s1 + $0x8] sm:$0xff]
  %v17 = vld [vmem:[%s2] sm:$0x1]
  %v19 = vperm.slane %v17, 0
  %v21 = vadd.f32 %v19, 0.0
  %23 = vset.pattern.permute.xlu0 0
  %24 = vperm.xlu0 %23, %v14
  %v25 = vpop.permute.xlu0 %24
  %v27 = vperm.slane %v15, 0
  %v28 = vmul.f32 %v25, %v27
  %v29 = vadd.f32 %v21, %v28
  %30 = vset.pattern.permute.xlu0 1
  %31 = vperm.xlu0 %30, %v14
  %v32 = vpop.permute.xlu0 %31
  %v34 = vperm.slane %v15, 1
  %v35 = vmul.f32 %v32, %v34
  %v36 = vadd.f32 %v29, %v35
  %37 = vset.pattern.permute.xlu0 2
  %38 = vperm.xlu0 %37, %v14
  %v39 = vpop.permute.xlu0 %38
  %v41 = vperm.slane %v15, 2
  %v42 = vmul.f32 %v39, %v41
  %v43 = vadd.f32 %v36, %v42
  %44 = vset.pattern.permute.xlu0 3
  %45 = vperm.xlu0 %44, %v14
  %v46 = vpop.permute.xlu0 %45
  %v48 = vperm.slane %v15, 3
  %v49 = vmul.f32 %v46, %v48
  %v50 = vadd.f32 %v43, %v49
  %51 = vset.pattern.permute.xlu0 4
  %52 = vperm.xlu0 %51, %v14
  %v53 = vpop.permute.xlu0 %52
  %v55 = vperm.slane %v15, 4
  %v56 = vmul.f32 %v53, %v55
  %v57 = vadd.f32 %v50, %v56
  %58 = vset.pattern.permute.xlu0 5
  %59 = vperm.xlu0 %58, %v14
  %v60 = vpop.permute.xlu0 %59
  %v62 = vperm.slane %v15, 5
  %v63 = vmul.f32 %v60, %v62
  %v64 = vadd.f32 %v57, %v63
  %65 = vset.pattern.permute.xlu0 6
  %66 = vperm.xlu0 %65, %v14
  %v67 = vpop.permute.xlu0 %66
  %v69 = vperm.slane %v15, 6
  %v70 = vmul.f32 %v67, %v69
  %v71 = vadd.f32 %v64, %v70
  %72 = vset.pattern.permute.xlu0 7
  %73 = vperm.xlu0 %72, %v14
  %v74 = vpop.permute.xlu0 %73
  %v76 = vperm.slane %v15, 7
  %v77 = vmul.f32 %v74, %v76
  %v78 = vadd.f32 %v71, %v77
  %79 = vset.pattern.permute.xlu0 8
  %80 = vperm.xlu0 %79, %v14
  %v81 = vpop.permute.xlu0 %80
  %v83 = vperm.slane %v16, 0
  %v84 = vmul.f32 %v81, %v83
  %v85 = vadd.f32 %v78, %v84
  %86 = vset.pattern.permute.xlu0 9
  %87 = vperm.xlu0 %86, %v14
  %v88 = vpop.permute.xlu0 %87
  %v90 = vperm.slane %v16, 1
  %v91 = vmul.f32 %v88, %v90
  %v92 = vadd.f32 %v85, %v91
  %93 = vset.pattern.permute.xlu0 10
  %94 = vperm.xlu0 %93, %v14
  %v95 = vpop.permute.xlu0 %94
  %v97 = vperm.slane %v16, 2
  %v98 = vmul.f32 %v95, %v97
  %v99 = vadd.f32 %v92, %v98
  %100 = vset.pattern.permute.xlu0 11
  %101 = vperm.xlu0 %100, %v14
  %v102 = vpop.permute.xlu0 %101
  %v104 = vperm.slane %v16, 3
  %v105 = vmul.f32 %v102, %v104
  %v106 = vadd.f32 %v99, %v105
  %107 = vset.pattern.permute.xlu0 12
  %108 = vperm.xlu0 %107, %v14
  %v109 = vpop.permute.xlu0 %108
  %v111 = vperm.slane %v16, 4
  %v112 = vmul.f32 %v109, %v111
  %v113 = vadd.f32 %v106, %v112
  %114 = vset.pattern.permute.xlu0 13
  %115 = vperm.xlu0 %114, %v14
  %v116 = vpop.permute.xlu0 %115
  %v118 = vperm.slane %v16, 5
  %v119 = vmul.f32 %v116, %v118
  %v120 = vadd.f32 %v113, %v119
  %121 = vset.pattern.permute.xlu0 14
  %122 = vperm.xlu0 %121, %v14
  %v123 = vpop.permute.xlu0 %122
  %v125 = vperm.slane %v16, 6
  %v126 = vmul.f32 %v123, %v125
  %v127 = vadd.f32 %v120, %v126
  %128 = vset.pattern.permute.xlu0 15
  %129 = vperm.xlu0 %128, %v14
  %v130 = vpop.permute.xlu0 %129
  %v132 = vperm.slane %v16, 7
  %v133 = vmul.f32 %v130, %v132
  %v134 = vadd.f32 %v127, %v133
  %135 = vst [vmem:[%s3] sm:$0xff] %v134
  // Predicated region
  $region14: #{temporal_feature_encoder.1} parent=0 // pred_check
    _
  $region15: #{temporal_feature_encoder.1} parent=0 // pred_check_branch
    %137 = sbr.rel (0) target = $region17
  $region16: #{temporal_feature_encoder.1} parent=0 // pred_region
    _
  $region17: #{temporal_feature_encoder.1} parent=0 // pred_fallthru
    _
  // Predicated region
  $region18: #{temporal_feature_encoder.1} parent=0 // pred_check
    _
  $region19: #{temporal_feature_encoder.1} parent=0 // pred_check_branch
    %139 = sbr.rel (0) target = $region21
  $region20: #{temporal_feature_encoder.1} parent=0 // pred_region
    _
  $region21: #{temporal_feature_encoder.1} parent=0 // pred_fallthru
    _

</llo_original>
